<compile_context>
chip_gen: v7x
topology: tpu7x:2x2x1
jax: 0.10.0
libtpu: 0.0.40
codegen_flags: <defaults>
</compile_context>

<pallas_src>
import jax
import jax.numpy as jnp
import numpy as np
from jax import lax
from jax.experimental import pallas as pl
from jax.experimental.pallas import tpu as pltpu

EPS = 1e-12  # matches torch.nn.functional.normalize default eps


def _arcsin_f32(x):
    """float32 arcsin for x in [0, 1] using only mul/add/sqrt/select.

    Cephes asinf algorithm (avoids relying on an asin lowering in Mosaic).
    """
    big = x > 0.5
    z = jnp.where(big, 0.5 * (1.0 - x), x * x)
    s = jnp.where(big, jnp.sqrt(z), x)
    p = z * (((((4.2163199048e-2 * z + 2.4181311049e-2) * z
                + 4.5470025998e-2) * z + 7.4953002686e-2) * z
              + 1.6666752422e-1))
    r = s + s * p                               # arcsin(s) for s <= ~0.7071
    return jnp.where(big, jnp.float32(np.pi / 2) - 2.0 * r, r)


def _prompt_batch_kernel(x_ref, en_ref, m2p_ref, o_ref):
    # x_ref:   [N, D]      f32 VMEM  (raw cutout embeddings)
    # en_ref:  [M, D]      f32 VMEM  (pre-normalized, all prompts concatenated)
    # m2p_ref: [M, P_pad]  f32 VMEM  (segment one-hot * weight_p / count_p)
    # o_ref:   [1, P_pad]  f32 VMEM  (per-prompt losses, lane-dense)
    x = x_ref[...]
    en = en_ref[...]
    n = x_ref.shape[0]

    # Pairwise raw dot products on the MXU, contracting the last dim of BOTH
    # operands (i.e. x @ en.T without materializing a transpose).
    dots = lax.dot_general(
        x, en,
        dimension_numbers=(((1,), (1,)), ((), ())),
        preferred_element_type=jnp.float32,
    )  # [N, M]

    # Scale the result (not the operand): F.normalize(x) . en  ==  (x . en) / max(||x||, eps)
    eps2 = jnp.float32(EPS * EPS)
    inv_x = lax.rsqrt(jnp.maximum(jnp.sum(x * x, axis=-1, keepdims=True), eps2))  # [N, 1]
    cos = dots * inv_x                                                            # [N, M]

    # Unit norms => squared chord distance = 2 - 2*cos; clip to [0, 4] so that
    # sqrt(d2)/2 <= 1 (NaN guard inside the arcsin polynomial).
    d2 = jnp.clip(2.0 - 2.0 * cos, 0.0, 4.0)
    half_chord = jnp.sqrt(d2) * 0.5                        # in [0, 1]

    # spherical distance loss: 2 * arcsin(chord / 2)^2
    dists = 2.0 * _arcsin_f32(half_chord) ** 2             # [N, M]

    # Per-prompt weighted sums in one small MXU op: m2p[m, p] already carries
    # weight_p / count_p for m in prompt p's segment (and 0 elsewhere).
    weighted = lax.dot_general(
        dists, m2p_ref[...],
        dimension_numbers=(((1,), (0,)), ((), ())),
        preferred_element_type=jnp.float32,
    )  # [N, P_pad]

    # Mean over cutouts (1/N is static) -> lane-dense [1, P_pad] store.
    o_ref[...] = jnp.sum(weighted, axis=0, keepdims=True) * jnp.float32(1.0 / n)


class Prompt:
    """Mirrors the PyTorch Prompt module (forward value only)."""

    def __init__(self, embed, weight=1.0, stop=float("-inf")):
        embed = jnp.asarray(embed, jnp.float32)
        if embed.ndim == 1:
            embed = embed[None, :]
        # Hoisted: `embed` is a registered buffer, normalize it exactly once
        # (torch F.normalize semantics: v / max(||v||, eps)).
        norm = jnp.maximum(jnp.linalg.norm(embed, axis=-1, keepdims=True), EPS)
        self.embed_normed = embed / norm
        self.weight = float(weight)
        self.stop = float(stop)  # TODO(synk): backward-only, unused in forward
        self._batch = None

    def __call__(self, x):
        if self._batch is None:
            self._batch = PromptBatch([self])
        return self._batch(x)[0]


class PromptBatch:
    """All prompts of a run fused into a single Pallas call.

    __call__(x) with x: [N, D] returns per-prompt losses, shape [num_prompts].
    (The total loss of the run is losses.sum().)
    """

    def __init__(self, prompts):
        assert len(prompts) >= 1
        self.num_prompts = len(prompts)
        sizes = [int(p.embed_normed.shape[0]) for p in prompts]
        self.en = jnp.concatenate([p.embed_normed for p in prompts], axis=0)  # [M, D]
        m_total = int(self.en.shape[0])
        # Pad the prompt axis to 128 lanes so the output block is lane-dense.
        p_pad = max(128, ((self.num_prompts + 127) // 128) * 128)
        m2p = np.zeros((m_total, p_pad), np.float32)
        off = 0
        for pi, (sz, pr) in enumerate(zip(sizes, prompts)):
            # abs(w)*sign(w) == w; divide by the per-prompt embed count here,
            # the 1/N factor is applied in-kernel (N is static per call).
            m2p[off:off + sz, pi] = pr.weight / float(sz)
            off += sz
        self.m2p = jnp.asarray(m2p)

    def __call__(self, x):
        x = jnp.asarray(x, jnp.float32)
        n, d = x.shape
        m = int(self.en.shape[0])
        p_pad = int(self.m2p.shape[1])

        cost = pl.CostEstimate(
            flops=2 * n * m * d + 2 * n * m * p_pad + 16 * n * m,
            transcendentals=n + 2 * n * m,
            bytes_accessed=4 * (n * d + m * d + m * p_pad + p_pad),
        )

        out = pl.pallas_call(
            _prompt_batch_kernel,
            out_shape=jax.ShapeDtypeStruct((1, p_pad), jnp.float32),
            in_specs=[
                pl.BlockSpec(memory_space=pltpu.MemorySpace.VMEM),   # x   [N, D]
                pl.BlockSpec(memory_space=pltpu.MemorySpace.VMEM),   # en  [M, D]
                pl.BlockSpec(memory_space=pltpu.MemorySpace.VMEM),   # m2p [M, P_pad]
            ],
            out_specs=pl.BlockSpec(memory_space=pltpu.MemorySpace.VMEM),
            cost_estimate=cost,
        )(x, self.en, self.m2p)
        return out[0, :self.num_prompts]


def _reference(x, e, w):
    """Pure-JAX reference mirroring the PyTorch forward exactly."""
    xn = x / jnp.maximum(jnp.linalg.norm(x, axis=-1, keepdims=True), EPS)
    en = e / jnp.maximum(jnp.linalg.norm(e, axis=-1, keepdims=True), EPS)
    d = jnp.linalg.norm(xn[:, None, :] - en[None, :, :], axis=-1)
    dists = 2.0 * jnp.arcsin(d / 2.0) ** 2
    dists = dists * jnp.sign(w)
    return jnp.abs(w) * jnp.mean(dists)


if __name__ == "__main__":
    N, D = 8, 128  # cutouts, embedding dim
    key = jax.random.PRNGKey(0)
    kx, k1, k2, k3 = jax.random.split(key, 4)
    x = jax.random.normal(kx, (N, D), dtype=jnp.float32)

    # Three prompts of a run (one has 2 embed rows, one a negative weight).
    raw_embeds = [
        jax.random.normal(k1, (1, D), dtype=jnp.float32),
        jax.random.normal(k2, (2, D), dtype=jnp.float32),
        jax.random.normal(k3, (1, D), dtype=jnp.float32),
    ]
    weights = [1.0, 0.5, -0.3]
    prompts = [Prompt(e, w) for e, w in zip(raw_embeds, weights)]

    # Batched path: one pallas_call for every prompt of the run.
    batch = PromptBatch(prompts)
    losses = jax.block_until_ready(batch(x))

    refs = np.array(
        [float(_reference(x, e, jnp.float32(w))) for e, w in zip(raw_embeds, weights)],
        dtype=np.float32,
    )
    np.testing.assert_allclose(np.asarray(losses), refs, rtol=1e-4, atol=1e-5)

    # Single-prompt module API (thin P=1 slice of the batched kernel).
    single = jax.block_until_ready(prompts[0](x))
    np.testing.assert_allclose(float(single), float(refs[0]), rtol=1e-4, atol=1e-5)

    print("KERNEL_OK")
</pallas_src>

<mosaic_0001>
module attributes {stable_mosaic.version = 11 : i64} {
  func.func @_prompt_batch_kernel(%arg0: memref<8x128xf32, #tpu.memory_space<vmem>>, %arg1: memref<4x128xf32, #tpu.memory_space<vmem>>, %arg2: memref<4x128xf32, #tpu.memory_space<vmem>>, %arg3: memref<1x128xf32, #tpu.memory_space<vmem>>) attributes {dimension_semantics = [], scalar_prefetch = 0 : i64, scratch_operands = 0 : i64, tpu.core_type = #tpu.core_type<tc>} {
    %c0 = arith.constant 0 : index
    %c0_0 = arith.constant 0 : index
    %0 = vector.load %arg0[%c0, %c0_0] : memref<8x128xf32, #tpu.memory_space<vmem>>, vector<8x128xf32>
    %c0_1 = arith.constant 0 : index
    %c0_2 = arith.constant 0 : index
    %1 = vector.load %arg1[%c0_1, %c0_2] : memref<4x128xf32, #tpu.memory_space<vmem>>, vector<4x128xf32>
    %cst = arith.constant dense<0.000000e+00> : vector<8x4xf32>
    %2 = tpu.matmul %0, %1, %cst {dimension_numbers = #tpu.dot_dimension_numbers<[1], [1], [0], [0], [0, 0, 1, 0], [], []>} : vector<8x128xf32>, vector<4x128xf32>, vector<8x4xf32> -> vector<8x4xf32>
    %3 = arith.mulf %0, %0 : vector<8x128xf32>
    %cst_3 = arith.constant dense<0.000000e+00> : vector<8xf32>
    %4 = vector.multi_reduction <add>, %3, %cst_3 [1] : vector<8x128xf32> to vector<8xf32>
    %5 = vector.shape_cast %4 : vector<8xf32> to vector<8x1xf32>
    %cst_4 = arith.constant 1.000000e-24 : f32
    %6 = vector.broadcast %cst_4 : f32 to vector<8x1xf32>
    %7 = arith.maximumf %5, %6 : vector<8x1xf32>
    %8 = math.rsqrt %7 : vector<8x1xf32>
    %9 = vector.broadcast %8 : vector<8x1xf32> to vector<8x4xf32>
    %10 = arith.mulf %2, %9 : vector<8x4xf32>
    %cst_5 = arith.constant 2.000000e+00 : f32
    %11 = vector.broadcast %cst_5 : f32 to vector<8x4xf32>
    %12 = arith.mulf %11, %10 : vector<8x4xf32>
    %cst_6 = arith.constant 2.000000e+00 : f32
    %13 = vector.broadcast %cst_6 : f32 to vector<8x4xf32>
    %14 = arith.subf %13, %12 : vector<8x4xf32>
    %cst_7 = arith.constant 0.000000e+00 : f32
    %cst_8 = arith.constant 4.000000e+00 : f32
    %15 = vector.broadcast %cst_7 : f32 to vector<8x4xf32>
    %16 = arith.maximumf %15, %14 : vector<8x4xf32>
    %17 = vector.broadcast %cst_8 : f32 to vector<8x4xf32>
    %18 = arith.minimumf %17, %16 : vector<8x4xf32>
    %19 = math.sqrt %18 : vector<8x4xf32>
    %cst_9 = arith.constant 5.000000e-01 : f32
    %20 = vector.broadcast %cst_9 : f32 to vector<8x4xf32>
    %21 = arith.mulf %19, %20 : vector<8x4xf32>
    %cst_10 = arith.constant 5.000000e-01 : f32
    %22 = vector.broadcast %cst_10 : f32 to vector<8x4xf32>
    %23 = arith.cmpf ogt, %21, %22 : vector<8x4xf32>
    %cst_11 = arith.constant 1.000000e+00 : f32
    %24 = vector.broadcast %cst_11 : f32 to vector<8x4xf32>
    %25 = arith.subf %24, %21 : vector<8x4xf32>
    %cst_12 = arith.constant 5.000000e-01 : f32
    %26 = vector.broadcast %cst_12 : f32 to vector<8x4xf32>
    %27 = arith.mulf %26, %25 : vector<8x4xf32>
    %28 = arith.mulf %21, %21 : vector<8x4xf32>
    %29 = arith.select %23, %27, %28 : vector<8x4xi1>, vector<8x4xf32>
    %30 = math.sqrt %29 : vector<8x4xf32>
    %31 = arith.select %23, %30, %21 : vector<8x4xi1>, vector<8x4xf32>
    %cst_13 = arith.constant 4.216320e-02 : f32
    %32 = vector.broadcast %cst_13 : f32 to vector<8x4xf32>
    %33 = arith.mulf %32, %29 : vector<8x4xf32>
    %cst_14 = arith.constant 0.024181312 : f32
    %34 = vector.broadcast %cst_14 : f32 to vector<8x4xf32>
    %35 = arith.addf %33, %34 : vector<8x4xf32>
    %36 = arith.mulf %35, %29 : vector<8x4xf32>
    %cst_15 = arith.constant 0.0454700254 : f32
    %37 = vector.broadcast %cst_15 : f32 to vector<8x4xf32>
    %38 = arith.addf %36, %37 : vector<8x4xf32>
    %39 = arith.mulf %38, %29 : vector<8x4xf32>
    %cst_16 = arith.constant 0.0749530047 : f32
    %40 = vector.broadcast %cst_16 : f32 to vector<8x4xf32>
    %41 = arith.addf %39, %40 : vector<8x4xf32>
    %42 = arith.mulf %41, %29 : vector<8x4xf32>
    %cst_17 = arith.constant 0.166667521 : f32
    %43 = vector.broadcast %cst_17 : f32 to vector<8x4xf32>
    %44 = arith.addf %42, %43 : vector<8x4xf32>
    %45 = arith.mulf %29, %44 : vector<8x4xf32>
    %46 = arith.mulf %31, %45 : vector<8x4xf32>
    %47 = arith.addf %31, %46 : vector<8x4xf32>
    %cst_18 = arith.constant 2.000000e+00 : f32
    %48 = vector.broadcast %cst_18 : f32 to vector<8x4xf32>
    %49 = arith.mulf %48, %47 : vector<8x4xf32>
    %cst_19 = arith.constant 1.57079637 : f32
    %50 = vector.broadcast %cst_19 : f32 to vector<8x4xf32>
    %51 = arith.subf %50, %49 : vector<8x4xf32>
    %52 = arith.select %23, %51, %47 : vector<8x4xi1>, vector<8x4xf32>
    %53 = arith.mulf %52, %52 : vector<8x4xf32>
    %cst_20 = arith.constant 2.000000e+00 : f32
    %54 = vector.broadcast %cst_20 : f32 to vector<8x4xf32>
    %55 = arith.mulf %54, %53 : vector<8x4xf32>
    %c0_21 = arith.constant 0 : index
    %c0_22 = arith.constant 0 : index
    %56 = vector.load %arg2[%c0_21, %c0_22] : memref<4x128xf32, #tpu.memory_space<vmem>>, vector<4x128xf32>
    %cst_23 = arith.constant dense<0.000000e+00> : vector<8x128xf32>
    %57 = tpu.matmul %55, %56, %cst_23 {dimension_numbers = #tpu.dot_dimension_numbers<[1], [0], [0], [1], [0, 0, 1, 1], [], []>} : vector<8x4xf32>, vector<4x128xf32>, vector<8x128xf32> -> vector<8x128xf32>
    %cst_24 = arith.constant dense<0.000000e+00> : vector<128xf32>
    %58 = vector.multi_reduction <add>, %57, %cst_24 [0] : vector<8x128xf32> to vector<128xf32>
    %59 = vector.shape_cast %58 : vector<128xf32> to vector<1x128xf32>
    %cst_25 = arith.constant 1.250000e-01 : f32
    %60 = vector.broadcast %cst_25 : f32 to vector<1x128xf32>
    %61 = arith.mulf %59, %60 : vector<1x128xf32>
    %c0_26 = arith.constant 0 : index
    %c0_27 = arith.constant 0 : index
    %62 = vector.load %arg3[%c0_26, %c0_27] : memref<1x128xf32, #tpu.memory_space<vmem>>, vector<1x128xf32>
    tpu.vector_store %arg3[%c0_26, %c0_27], %61 {strides = array<i32>} : memref<1x128xf32, #tpu.memory_space<vmem>>, vector<1x128xf32>,
    return
  }
}

</mosaic_0001>

<llo_original>
// kernel: tpu_custom_call.1
$region0: #{tpu_custom_call.1}
  #allocation0 [shape = 'u32[]', space=smem, size = 0x4, offset = 0x4, fixed_abs, tag = 'smem constant byte address 0x4 - core index']
  #allocation1 [shape = 'u32[144,128]{1,0:T(1,128)}', space=vmem, size = 0x12000, scoped, tag = 'internal scratch']
  %s0 = inlined_call_operand.hbm [shape: f32[8,128], index: 0, kind: input, shape index: {}]
  %s1 = inlined_call_operand.hbm [shape: f32[4,128], index: 1, kind: input, shape index: {}]
  %s2 = inlined_call_operand.vmem [shape: f32[4,128], index: 2, kind: input, shape index: {}]
  %s3 = inlined_call_operand.hbm [shape: f32[1,128], index: 3, kind: output, shape index: {}]
  %s4 = sld [smem:[#allocation0]]
  $region30: #{tpu_custom_call.1} parent=0
    _
  %s6 = ssub.s32 1, %s4
  %s7 = scalar_select 0, %s6, %s4
  $region1: #{tpu_custom_call.1} parent=0
    #allocation2 [shape = 'u8[4096]{0}', space=vmem, size = 0x1000, scoped, tag = 'input window, operand 0, single buffered']
    #allocation3 [shape = 's32[1]{0}', space=sflag, size = 0x4, scoped, tag = 'scoped memory for tpu_custom_call.1']
    #allocation4 [shape = 's32[1]{0}', space=sflag, size = 0x4, scoped, tag = 'scoped memory for tpu_custom_call.1']
    #allocation5 [shape = 'u8[2048]{0}', space=vmem, size = 0x800, scoped, tag = 'input window, operand 1, single buffered']
    #allocation6 [shape = 's32[1]{0}', space=sflag, size = 0x4, scoped, tag = 'scoped memory for tpu_custom_call.1']
    #allocation7 [shape = 'u8[512]{0}', space=vmem, size = 0x400, scoped, tag = 'output window, operand 0, single buffered']
    %8 = vsyncpa [#allocation3], 0
    %9 = vsyncpa [#allocation6], 0
    %10 = vsyncpa [#allocation4], 0
    // Predicated region
    $region2: #{tpu_custom_call.1} parent=1 // pred_check
      _
    $region3: #{tpu_custom_call.1} parent=1 // pred_check_branch
      %12 = sbr.rel (0) target = $region5
    $region4: #{tpu_custom_call.1} parent=1 // pred_region
      %s14 = ssub.s32 128, 128
      %15 = vsyncadd [#allocation3], %s14
      %s17 = sshll.u32 [#allocation2], 4
      %s18 = int_to_ptr.vmem [resolvable:$true] %s17
      %20 = dma.hbm_to_vmem [thread:$0]  %s0, 128, %s18, [#allocation3]
    $region5: #{tpu_custom_call.1} parent=1 // pred_fallthru
      _
    // Predicated region
    $region6: #{tpu_custom_call.1} parent=1 // pred_check
      _
    $region7: #{tpu_custom_call.1} parent=1 // pred_check_branch
      %22 = sbr.rel (0) target = $region9
    $region8: #{tpu_custom_call.1} parent=1 // pred_region
      %s24 = ssub.s32 64, 64
      %25 = vsyncadd [#allocation6], %s24
      %s27 = sshll.u32 [#allocation5], 4
      %s28 = int_to_ptr.vmem [resolvable:$true] %s27
      %30 = dma.hbm_to_vmem [thread:$0]  %s1, 64, %s28, [#allocation6]
    $region9: #{tpu_custom_call.1} parent=1 // pred_fallthru
      _
    // Predicated region
    $region10: #{tpu_custom_call.1} parent=1 // pred_check
      _
    $region11: #{tpu_custom_call.1} parent=1 // pred_check_branch
      %32 = sbr.rel (0) target = $region13
    $region12: #{tpu_custom_call.1} parent=1 // pred_region
      _
    $region13: #{tpu_custom_call.1} parent=1 // pred_fallthru
      _
    // Predicated region
    $region14: #{tpu_custom_call.1} parent=1 // pred_check
      _
    $region15: #{tpu_custom_call.1} parent=1 // pred_check_branch
      %34 = sbr.rel (0) target = $region17
    $region16: #{tpu_custom_call.1} parent=1 // pred_region
      %35 = dma.done [#allocation3], 128
    $region17: #{tpu_custom_call.1} parent=1 // pred_fallthru
      _
    // Predicated region
    $region18: #{tpu_custom_call.1} parent=1 // pred_check
      _
    $region19: #{tpu_custom_call.1} parent=1 // pred_check_branch
      %37 = sbr.rel (0) target = $region21
    $region20: #{tpu_custom_call.1} parent=1 // pred_region
      %38 = dma.done [#allocation6], 64
    $region21: #{tpu_custom_call.1} parent=1 // pred_fallthru
      _
    %v39 = vld [vmem:[#allocation2] sm:$0xff]
    %v40 = vld [vmem:[#allocation5] sm:$0xf]
    %41 = vmatprep.subr.mxu0 0.0
    %42 = vmatpush1.xpose.msra.mxu0 %v40
    %43 = vmatprep.subr.mxu0 0.0
    %44 = vmatpush1.xpose.msra.mxu0 0.0
    %45 = vmatprep.subr.mxu0 0.0
    %46 = vmatpush1.xpose.msra.mxu0 0.0
    %47 = vmatprep.subr.mxu0 0.0
    %48 = vmatpush1.xpose.msra.mxu0 0.0
    %49 = vmatprep.subr.mxu0 0.0
    %50 = vmatpush1.xpose.msra.mxu0 0.0
    %51 = vmatprep.subr.mxu0 0.0
    %52 = vmatpush1.xpose.msra.mxu0 0.0
    %53 = vmatprep.subr.mxu0 0.0
    %54 = vmatpush1.xpose.msra.mxu0 0.0
    %55 = vmatprep.subr.mxu0 0.0
    %56 = vmatpush1.xpose.msra.mxu0 0.0
    %57 = vmatprep.subr.mxu0 0.0
    %58 = vmatpush1.xpose.msra.mxu0 0.0
    %59 = vmatprep.subr.mxu0 0.0
    %60 = vmatpush1.xpose.msra.mxu0 0.0
    %61 = vmatprep.subr.mxu0 0.0
    %62 = vmatpush1.xpose.msra.mxu0 0.0
    %63 = vmatprep.subr.mxu0 0.0
    %64 = vmatpush1.xpose.msra.mxu0 0.0
    %65 = vmatprep.subr.mxu0 0.0
    %66 = vmatpush1.xpose.msra.mxu0 0.0
    %67 = vmatprep.subr.mxu0 0.0
    %68 = vmatpush1.xpose.msra.mxu0 0.0
    %69 = vmatprep.subr.mxu0 0.0
    %70 = vmatpush1.xpose.msra.mxu0 0.0
    %71 = vmatprep.subr.mxu0 0.0
    %72 = vmatpush1.xpose.msra.mxu0 0.0
    %73 = vmatprep.subr.mxu0 0.0
    %74 = vmatpush1.xpose.msra.mxu0 0.0
    %75 = vmatprep.subr.mxu0 0.0
    %76 = vmatpush1.xpose.msra.mxu0 0.0
    %77 = vmatprep.subr.mxu0 0.0
    %78 = vmatpush1.xpose.msra.mxu0 0.0
    %79 = vmatprep.subr.mxu0 0.0
    %80 = vmatpush1.xpose.msra.mxu0 0.0
    %81 = vmatprep.subr.mxu0 0.0
    %82 = vmatpush1.xpose.msra.mxu0 0.0
    %83 = vmatprep.subr.mxu0 0.0
    %84 = vmatpush1.xpose.msra.mxu0 0.0
    %85 = vmatprep.subr.mxu0 0.0
    %86 = vmatpush1.xpose.msra.mxu0 0.0
    %87 = vmatprep.subr.mxu0 0.0
    %88 = vmatpush1.xpose.msra.mxu0 0.0
    %89 = vmatprep.subr.mxu0 0.0
    %90 = vmatpush1.xpose.msra.mxu0 0.0
    %91 = vmatprep.subr.mxu0 0.0
    %92 = vmatpush1.xpose.msra.mxu0 0.0
    %93 = vmatprep.subr.mxu0 0.0
    %94 = vmatpush1.xpose.msra.mxu0 0.0
    %95 = vmatprep.subr.mxu0 0.0
    %96 = vmatpush1.xpose.msra.mxu0 0.0
    %97 = vmatprep.subr.mxu0 0.0
    %98 = vmatpush1.xpose.msra.mxu0 0.0
    %99 = vmatprep.subr.mxu0 0.0
    %100 = vmatpush1.xpose.msra.mxu0 0.0
    %101 = vmatprep.subr.mxu0 0.0
    %102 = vmatpush1.xpose.msra.mxu0 0.0
    %103 = vmatprep.subr.mxu0 0.0
    %104 = vmatpush1.xpose.msra.mxu0 0.0
    %105 = vmatprep.mubr.f32.mxu0 0.0
    %106 = vmatmul.mubr.f32.gmra.mrb[0].mxu0 %v39
    %v107 = vpop.f32.mrb[0].mxu0
    %v108 = vadd.f32 0.0, %v107
    %v109 = vpop.f32.mrb[0].mxu0
    %110 = vdwg.mxu0
    %v111 = vmul.f32 %v39, %v39
    %112 = vadd.xlane.f32.xlu0 %v111
    %v113 = vpop.xlane.xlu0 %112
    %v114 = vmax.f32 %v113, 1e-24
    %v115 = vrsqrt.pop %v114
    %v116 = vmul.f32 %v108, %v115
    %v117 = vmul.f32 %v116, 2.0
    %v118 = vsub.f32 2.0, %v117
    %v119 = vmax.f32 %v118, 0.0
    %v120 = vmin.f32 %v119, 4.0
    %v121 = vrsqrt.pop %v120
    %v122 = vmul.f32 %v120, %v121
    %vm123 = vcmp.eq.f32.partialorder %v120, inf
    %v124 = vsel %vm123, %v120, %v122
    %vm125 = vcmp.eq.f32.partialorder %v120, 0.0
    %v126 = vand.u32 %v120, 2147483648
    %v127 = vsel %vm125, %v126, %v124
    %v128 = vmul.f32 %v127, 0.5
    %vm129 = vcmp.gt.f32.partialorder %v128, 0.5
    %v130 = vsub.f32 1.0, %v128
    %v131 = vmul.f32 %v130, 0.5
    %v132 = vmul.f32 %v128, %v128
    %v133 = vsel %vm129, %v131, %v132
    %v134 = vrsqrt.pop %v133
    %v135 = vmul.f32 %v133, %v134
    %vm136 = vcmp.eq.f32.partialorder %v133, inf
    %v137 = vsel %vm136, %v133, %v135
    %vm138 = vcmp.eq.f32.partialorder %v133, 0.0
    %v139 = vand.u32 %v133, 2147483648
    %v140 = vsel %vm138, %v139, %v137
    %v141 = vsel %vm129, %v140, %v128
    %v142 = vmul.f32 %v133, 0.0421632
    %v143 = vadd.f32 %v142, 0.024181312
    %v144 = vmul.f32 %v143, %v133
    %v145 = vadd.f32 %v144, 0.045470025
    %v146 = vmul.f32 %v145, %v133
    %v147 = vadd.f32 %v146, 0.074953005
    %v148 = vmul.f32 %v147, %v133
    %v149 = vadd.f32 %v148, 0.16666752
    %v150 = vmul.f32 %v133, %v149
    %v151 = vmul.f32 %v141, %v150
    %v152 = vadd.f32 %v141, %v151
    %v153 = vmul.f32 %v152, 2.0
    %v154 = vsub.f32 1.5707964, %v153
    %v155 = vsel %vm129, %v154, %v152
    %v156 = vmul.f32 %v155, %v155
    %v157 = vmul.f32 %v156, 2.0
    %v158 = vld [vmem:[%s2] sm:$0xf]
    %vm159 = vcmask 31744
    %v161 = vsel %vm159, %v157, 0
    %vm163 = vcmask 1043456
    %v165 = vsel %vm163, %v158, 0
    %167 = vmatprep.subr.mxu0 0.0
    %168 = vmatpush1.msra.mxu0 %v165
    %169 = vmatprep.subr.mxu0 0.0
    %170 = vmatpush1.msra.mxu0 0.0
    %171 = vmatprep.subr.mxu0 0.0
    %172 = vmatpush1.msra.mxu0 0.0
    %173 = vmatprep.subr.mxu0 0.0
    %174 = vmatpush1.msra.mxu0 0.0
    %175 = vmatprep.subr.mxu0 0.0
    %176 = vmatpush1.msra.mxu0 0.0
    %177 = vmatprep.subr.mxu0 0.0
    %178 = vmatpush1.msra.mxu0 0.0
    %179 = vmatprep.subr.mxu0 0.0
    %180 = vmatpush1.msra.mxu0 0.0
    %181 = vmatprep.subr.mxu0 0.0
    %182 = vmatpush1.msra.mxu0 0.0
    %183 = vmatprep.subr.mxu0 0.0
    %184 = vmatpush1.msra.mxu0 0.0
    %185 = vmatprep.subr.mxu0 0.0
    %186 = vmatpush1.msra.mxu0 0.0
    %187 = vmatprep.subr.mxu0 0.0
    %188 = vmatpush1.msra.mxu0 0.0
    %189 = vmatprep.subr.mxu0 0.0
    %190 = vmatpush1.msra.mxu0 0.0
    %191 = vmatprep.subr.mxu0 0.0
    %192 = vmatpush1.msra.mxu0 0.0
    %193 = vmatprep.subr.mxu0 0.0
    %194 = vmatpush1.msra.mxu0 0.0
    %195 = vmatprep.subr.mxu0 0.0
    %196 = vmatpush1.msra.mxu0 0.0
    %197 = vmatprep.subr.mxu0 0.0
    %198 = vmatpush1.msra.mxu0 0.0
    %199 = vmatprep.subr.mxu0 0.0
    %200 = vmatpush1.msra.mxu0 0.0
    %201 = vmatprep.subr.mxu0 0.0
    %202 = vmatpush1.msra.mxu0 0.0
    %203 = vmatprep.subr.mxu0 0.0
    %204 = vmatpush1.msra.mxu0 0.0
    %205 = vmatprep.subr.mxu0 0.0
    %206 = vmatpush1.msra.mxu0 0.0
    %207 = vmatprep.subr.mxu0 0.0
    %208 = vmatpush1.msra.mxu0 0.0
    %209 = vmatprep.subr.mxu0 0.0
    %210 = vmatpush1.msra.mxu0 0.0
    %211 = vmatprep.subr.mxu0 0.0
    %212 = vmatpush1.msra.mxu0 0.0
    %213 = vmatprep.subr.mxu0 0.0
    %214 = vmatpush1.msra.mxu0 0.0
    %215 = vmatprep.subr.mxu0 0.0
    %216 = vmatpush1.msra.mxu0 0.0
    %217 = vmatprep.subr.mxu0 0.0
    %218 = vmatpush1.msra.mxu0 0.0
    %219 = vmatprep.subr.mxu0 0.0
    %220 = vmatpush1.msra.mxu0 0.0
    %221 = vmatprep.subr.mxu0 0.0
    %222 = vmatpush1.msra.mxu0 0.0
    %223 = vmatprep.subr.mxu0 0.0
    %224 = vmatpush1.msra.mxu0 0.0
    %225 = vmatprep.subr.mxu0 0.0
    %226 = vmatpush1.msra.mxu0 0.0
    %227 = vmatprep.subr.mxu0 0.0
    %228 = vmatpush1.msra.mxu0 0.0
    %229 = vmatprep.subr.mxu0 0.0
    %230 = vmatpush1.msra.mxu0 0.0
    %231 = vmatprep.mubr.f32.mxu0 0.0
    %232 = vmatmul.mubr.f32.gmra.mrb[0].mxu0 %v161
    %v233 = vpop.f32.mrb[0].mxu0
    %v234 = vadd.f32 0.0, %v233
    %v235 = vpop.f32.mrb[0].mxu0
    %236 = vdwg.mxu0
    %v237 = vrot.slane %v234, 4
    %v238 = vadd.f32 %v234, %v237
    %v239 = vrot.slane %v238, 2
    %v240 = vadd.f32 %v238, %v239
    %v241 = vrot.slane %v240, 1
    %v242 = vadd.f32 %v240, %v241
    %v243 = vmul.f32 %v242, 0.125
    %244 = vst [vmem:[#allocation7] sm:$0x1] %v243
    // Predicated region
    $region22: #{tpu_custom_call.1} parent=1 // pred_check
      _
    $region23: #{tpu_custom_call.1} parent=1 // pred_check_branch
      %246 = sbr.rel (0) target = $region25
    $region24: #{tpu_custom_call.1} parent=1 // pred_region
      %s248 = ssub.s32 16, 16
      %249 = vsyncadd [#allocation4], %s248
      %s251 = sshll.u32 [#allocation7], 4
      %s252 = int_to_ptr.vmem [resolvable:$true] %s251
      %254 = dma.vmem_to_hbm [thread:$0]  %s252, 16, %s3, [#allocation4]
    $region25: #{tpu_custom_call.1} parent=1 // pred_fallthru
      _
    // Predicated region
    $region26: #{tpu_custom_call.1} parent=1 // pred_check
      _
    $region27: #{tpu_custom_call.1} parent=1 // pred_check_branch
      %256 = sbr.rel (0) target = $region29
    $region28: #{tpu_custom_call.1} parent=1 // pred_region
      %257 = dma.done [#allocation4], 16
    $region29: #{tpu_custom_call.1} parent=1 // pred_fallthru
      _
    %258 = vsyncpa [#allocation3], 1
    %259 = vsyncpa [#allocation6], 1
    %260 = vsyncpa [#allocation4], 1

</llo_original>
